<compile_context>
chip_gen: v7x
topology: tpu7x:2x2x1
jax: 0.10.0
libtpu: 0.0.40
codegen_flags: <defaults>
</compile_context>

<pallas_src>
import jax
import jax.numpy as jnp
from jax.experimental import pallas as pl
from jax.experimental.pallas import tpu as pltpu

INPUT_DIM = 3
HIDDEN_DIM = 32


# ---------------------------------------------------------------------------
# Single-sample kernel (matches the PyTorch forward signature exactly)
# ---------------------------------------------------------------------------
def _mlp_single_kernel(s_ref, wp_ref, o_ref):
    # s_ref  : (3,)      f32 SMEM  = [error, derror, ierror]
    # wp_ref : (6, 32)   f32 VMEM  = rows [w1_in0, w1_in1, w1_in2, b1, w2, b2]
    # o_ref  : (1, 1)    f32 VMEM
    e = s_ref[0]
    de = s_ref[1]
    ie = s_ref[2]
    # Layer 1: three scalar * row FMAs on the VPU.
    h = (e * wp_ref[0:1, :]
         + de * wp_ref[1:2, :]
         + ie * wp_ref[2:3, :]
         + wp_ref[3:4, :])                                   # (1, 32)
    h = jnp.maximum(h, 0.0)                                  # ReLU
    # Layer 2: elementwise multiply + lane reduction (XLU) + bias.
    y = jnp.sum(h * wp_ref[4:5, :], axis=-1, keepdims=True) + wp_ref[5:6, 0:1]
    o_ref[...] = y                                           # (1, 1)


def nn_pid_forward(error, derror, ierror, packed_w_single):
    """Pallas-backed NNPIDController forward. Returns shape (1,) f32."""
    s = jnp.stack([
        jnp.asarray(error, jnp.float32).reshape(()),
        jnp.asarray(derror, jnp.float32).reshape(()),
        jnp.asarray(ierror, jnp.float32).reshape(()),
    ])
    out = pl.pallas_call(
        _mlp_single_kernel,
        out_shape=jax.ShapeDtypeStruct((1, 1), jnp.float32),
        in_specs=[pl.BlockSpec(memory_space=pltpu.MemorySpace.SMEM),
                  pl.BlockSpec(memory_space=pltpu.MemorySpace.VMEM)],
        out_specs=pl.BlockSpec(memory_space=pltpu.MemorySpace.VMEM),
    )(s, packed_w_single)
    return out.reshape(1)  # matches PyTorch output shape (1,)


# ---------------------------------------------------------------------------
# Batched, lane-dense kernel: batch on the lane axis, hidden on sublanes.
# ---------------------------------------------------------------------------
def _mlp_batched_kernel(x_ref, wb_ref, o_ref):
    # x_ref  : (3, TB)   f32 VMEM  (batch on lanes)
    # wb_ref : (32, 6)   f32 VMEM  = cols [w1_in0, w1_in1, w1_in2, b1, w2, b2]
    # o_ref  : (1, TB)   f32 VMEM  (lane-dense output slab)
    w = wb_ref[...]
    h = (w[:, 0:1] * x_ref[0:1, :]
         + w[:, 1:2] * x_ref[1:2, :]
         + w[:, 2:3] * x_ref[2:3, :]
         + w[:, 3:4])                                        # (32, TB)
    h = jnp.maximum(h, 0.0)
    # Reduce over the hidden (sublane) axis -> lane-dense (1, TB) row.
    y = jnp.sum(h * w[:, 4:5], axis=0, keepdims=True) + w[0:1, 5:6]
    o_ref[...] = y


def _choose_block_b(batch, block_b_max=512):
    """Lane-multiple tile; >= 2 grid steps when possible (v7x has 2 TCs)."""
    target = -(-batch // 2)                       # cdiv(batch, 2)
    target = ((target + 127) // 128) * 128        # round up to lane multiple
    return max(128, min(block_b_max, target))


def nn_pid_forward_batched(x, packed_w_batched, *, block_b=None):
    """Batched forward: x is (B, 3) rows of [error, derror, ierror].

    Returns (B, 1) f32. Weights stay VMEM-resident across the grid (constant
    index_map); the batch axis is "parallel" so both v7x TensorCores share it.
    """
    x = jnp.asarray(x, jnp.float32)
    B = x.shape[0]
    if block_b is None:
        block_b = _choose_block_b(B)
    xt = x.T                                      # (3, B): layout plumbing only
    out = pl.pallas_call(
        _mlp_batched_kernel,
        out_shape=jax.ShapeDtypeStruct((1, B), jnp.float32),
        grid=(pl.cdiv(B, block_b),),
        in_specs=[
            pl.BlockSpec((INPUT_DIM, block_b), lambda i: (0, i)),
            pl.BlockSpec((HIDDEN_DIM, 6), lambda i: (0, 0)),
        ],
        out_specs=pl.BlockSpec((1, block_b), lambda i: (0, i)),
        compiler_params=pltpu.CompilerParams(
            dimension_semantics=("parallel",)),
    )(xt, packed_w_batched)
    return out.reshape(B, 1)


# ---------------------------------------------------------------------------
# Params (torch layout), one-time packing, and pure-JAX references
# ---------------------------------------------------------------------------
def init_params(key):
    """nn.Linear-style init, torch layouts: w1 (32,3), b1 (32,), w2 (1,32), b2 (1,)."""
    k1, k2, k3, k4 = jax.random.split(key, 4)
    bound1 = 1.0 / jnp.sqrt(float(INPUT_DIM))
    bound2 = 1.0 / jnp.sqrt(float(HIDDEN_DIM))
    w1 = jax.random.uniform(k1, (HIDDEN_DIM, INPUT_DIM), jnp.float32, -bound1, bound1)
    b1 = jax.random.uniform(k2, (HIDDEN_DIM,), jnp.float32, -bound1, bound1)
    w2 = jax.random.uniform(k3, (1, HIDDEN_DIM), jnp.float32, -bound2, bound2)
    b2 = jax.random.uniform(k4, (1,), jnp.float32, -bound2, bound2)
    return w1, b1, w2, b2


def pack_weights_single(params):
    """(6, 32): rows 0-2 = w1 weights per input feature, 3 = b1, 4 = w2, 5 = b2."""
    w1, b1, w2, b2 = params
    return jnp.concatenate([
        w1.T,                                     # (3, 32)
        b1.reshape(1, HIDDEN_DIM),
        w2.reshape(1, HIDDEN_DIM),
        jnp.full((1, HIDDEN_DIM), b2[0], jnp.float32),
    ], axis=0)


def pack_weights_batched(params):
    """(32, 6): cols 0-2 = w1 weights per input feature, 3 = b1, 4 = w2, 5 = b2."""
    w1, b1, w2, b2 = params
    return jnp.concatenate([
        w1,                                       # (32, 3)
        b1.reshape(HIDDEN_DIM, 1),
        w2.reshape(HIDDEN_DIM, 1),
        jnp.full((HIDDEN_DIM, 1), b2[0], jnp.float32),
    ], axis=1)


def reference_forward(error, derror, ierror, params):
    w1, b1, w2, b2 = params
    x = jnp.stack([error, derror, ierror]).astype(jnp.float32)
    h = jnp.maximum(w1 @ x + b1, 0.0)
    return w2 @ h + b2                            # (1,)


def reference_batched(x, params):
    w1, b1, w2, b2 = params
    h = jnp.maximum(x @ w1.T + b1, 0.0)           # (B, 32)
    return h @ w2.T + b2                          # (B, 1)


if __name__ == "__main__":
    key = jax.random.PRNGKey(0)
    pkey, ikey, bkey = jax.random.split(key, 3)
    params = init_params(pkey)
    wp = pack_weights_single(params)
    wb = pack_weights_batched(params)

    # ---- single-sample path (matches PyTorch forward exactly) ----
    e, de, ie = jax.random.normal(ikey, (3,), jnp.float32)
    out = nn_pid_forward(e, de, ie, wp)
    jax.block_until_ready(out)
    ref = reference_forward(e, de, ie, params)
    assert out.shape == (1,)
    assert jnp.allclose(out, ref, atol=1e-5, rtol=1e-5), (out, ref)

    # ---- batched rollout path (lane-dense, >=2 grid steps, no wrapper pad) ----
    for B in (512, 200):
        xb = jax.random.normal(jax.random.fold_in(bkey, B), (B, INPUT_DIM),
                               jnp.float32)
        outb = nn_pid_forward_batched(xb, wb)
        jax.block_until_ready(outb)
        refb = reference_batched(xb, params)
        assert outb.shape == (B, 1)
        assert jnp.allclose(outb, refb, atol=1e-5, rtol=1e-5), B

    print("KERNEL_OK")
</pallas_src>

<mosaic_0001>
module attributes {stable_mosaic.version = 11 : i64} {
  func.func @_mlp_single_kernel(%arg0: memref<3xf32, #tpu.memory_space<smem>>, %arg1: memref<6x32xf32, #tpu.memory_space<vmem>>, %arg2: memref<1x1xf32, #tpu.memory_space<vmem>>) attributes {dimension_semantics = [], scalar_prefetch = 0 : i64, scratch_operands = 0 : i64, tpu.core_type = #tpu.core_type<tc>} {
    %c0 = arith.constant 0 : index
    %0 = memref.load %arg0[%c0] : memref<3xf32, #tpu.memory_space<smem>>
    %c1 = arith.constant 1 : index
    %1 = memref.load %arg0[%c1] : memref<3xf32, #tpu.memory_space<smem>>
    %c2 = arith.constant 2 : index
    %2 = memref.load %arg0[%c2] : memref<3xf32, #tpu.memory_space<smem>>
    %c0_0 = arith.constant 0 : index
    %c0_1 = arith.constant 0 : index
    %3 = vector.load %arg1[%c0_0, %c0_1] : memref<6x32xf32, #tpu.memory_space<vmem>>, vector<1x32xf32>
    %4 = vector.broadcast %0 : f32 to vector<1x32xf32>
    %5 = arith.mulf %4, %3 : vector<1x32xf32>
    %c1_2 = arith.constant 1 : index
    %c0_3 = arith.constant 0 : index
    %6 = vector.load %arg1[%c1_2, %c0_3] : memref<6x32xf32, #tpu.memory_space<vmem>>, vector<1x32xf32>
    %7 = vector.broadcast %1 : f32 to vector<1x32xf32>
    %8 = arith.mulf %7, %6 : vector<1x32xf32>
    %9 = arith.addf %5, %8 : vector<1x32xf32>
    %c2_4 = arith.constant 2 : index
    %c0_5 = arith.constant 0 : index
    %10 = vector.load %arg1[%c2_4, %c0_5] : memref<6x32xf32, #tpu.memory_space<vmem>>, vector<1x32xf32>
    %11 = vector.broadcast %2 : f32 to vector<1x32xf32>
    %12 = arith.mulf %11, %10 : vector<1x32xf32>
    %13 = arith.addf %9, %12 : vector<1x32xf32>
    %c3 = arith.constant 3 : index
    %c0_6 = arith.constant 0 : index
    %14 = vector.load %arg1[%c3, %c0_6] : memref<6x32xf32, #tpu.memory_space<vmem>>, vector<1x32xf32>
    %15 = arith.addf %13, %14 : vector<1x32xf32>
    %cst = arith.constant 0.000000e+00 : f32
    %16 = vector.broadcast %cst : f32 to vector<1x32xf32>
    %17 = arith.maximumf %15, %16 : vector<1x32xf32>
    %c4 = arith.constant 4 : index
    %c0_7 = arith.constant 0 : index
    %18 = vector.load %arg1[%c4, %c0_7] : memref<6x32xf32, #tpu.memory_space<vmem>>, vector<1x32xf32>
    %19 = arith.mulf %17, %18 : vector<1x32xf32>
    %cst_8 = arith.constant dense<0.000000e+00> : vector<1xf32>
    %20 = vector.multi_reduction <add>, %19, %cst_8 [1] : vector<1x32xf32> to vector<1xf32>
    %21 = vector.shape_cast %20 : vector<1xf32> to vector<1x1xf32>
    %c5 = arith.constant 5 : index
    %c0_9 = arith.constant 0 : index
    %22 = vector.load %arg1[%c5, %c0_9] : memref<6x32xf32, #tpu.memory_space<vmem>>, vector<1x1xf32>
    %23 = arith.addf %21, %22 : vector<1x1xf32>
    %c0_10 = arith.constant 0 : index
    %c0_11 = arith.constant 0 : index
    %24 = vector.load %arg2[%c0_10, %c0_11] : memref<1x1xf32, #tpu.memory_space<vmem>>, vector<1x1xf32>
    tpu.vector_store %arg2[%c0_10, %c0_11], %23 {strides = array<i32>} : memref<1x1xf32, #tpu.memory_space<vmem>>, vector<1x1xf32>,
    return
  }
}

</mosaic_0001>

<llo_original>
// kernel: tpu_custom_call.1
$region0: #{tpu_custom_call.1}
  #allocation0 [shape = 'u32[]', space=smem, size = 0x4, offset = 0x4, fixed_abs, tag = 'smem constant byte address 0x4 - core index']
  #allocation1 [shape = 'u32[144,128]{1,0:T(1,128)}', space=vmem, size = 0x12000, scoped, tag = 'internal scratch']
  %s0 = inlined_call_operand.hbm [shape: f32[3], index: 0, kind: input, shape index: {}]
  %s1 = inlined_call_operand.hbm [shape: f32[6,32], index: 1, kind: input, shape index: {}]
  %s2 = inlined_call_operand.hbm [shape: f32[1,1], index: 2, kind: output, shape index: {}]
  %s3 = sld [smem:[#allocation0]]
  $region26: #{tpu_custom_call.1} parent=0
    _
  %s5 = ssub.s32 1, %s3
  %s6 = scalar_select 0, %s5, %s3
  $region1: #{tpu_custom_call.1} parent=0
    #allocation2 [shape = 'u8[512]{0}', space=smem, size = 0x200, scoped, tag = 'input window, operand 0, single buffered']
    #allocation3 [shape = 's32[1]{0}', space=sflag, size = 0x4, scoped, tag = 'scoped memory for tpu_custom_call.1']
    #allocation4 [shape = 's32[1]{0}', space=sflag, size = 0x4, scoped, tag = 'scoped memory for tpu_custom_call.1']
    #allocation5 [shape = 's32[1]{0}', space=sflag, size = 0x4, scoped, tag = 'scoped memory for tpu_custom_call.1']
    #allocation6 [shape = 'u8[4096]{0}', space=vmem, size = 0x1000, scoped, tag = 'input window, operand 1, single buffered']
    #allocation7 [shape = 'u8[512]{0}', space=vmem, size = 0x400, scoped, tag = 'output window, operand 0, single buffered']
    %7 = vsyncpa [#allocation5], 0
    %8 = vsyncpa [#allocation3], 0
    %9 = vsyncpa [#allocation4], 0
    // Predicated region
    $region2: #{tpu_custom_call.1} parent=1 // pred_check
      _
    $region3: #{tpu_custom_call.1} parent=1 // pred_check_branch
      %11 = sbr.rel (0) target = $region5
    $region4: #{tpu_custom_call.1} parent=1 // pred_region
      %s13 = ssub.s32 16, 16
      %14 = vsyncadd [#allocation5], %s13
      %17 = dma.hbm_to_smem %s0, 16, [#allocation2], [#allocation5]
    $region5: #{tpu_custom_call.1} parent=1 // pred_fallthru
      _
    // Predicated region
    $region6: #{tpu_custom_call.1} parent=1 // pred_check
      _
    $region7: #{tpu_custom_call.1} parent=1 // pred_check_branch
      %19 = sbr.rel (0) target = $region9
    $region8: #{tpu_custom_call.1} parent=1 // pred_region
      %s21 = ssub.s32 128, 128
      %22 = vsyncadd [#allocation3], %s21
      %s24 = sshll.u32 [#allocation6], 4
      %s25 = int_to_ptr.vmem [resolvable:$true] %s24
      %27 = dma.hbm_to_vmem [thread:$0]  %s1, 128, %s25, [#allocation3]
    $region9: #{tpu_custom_call.1} parent=1 // pred_fallthru
      _
    // Predicated region
    $region10: #{tpu_custom_call.1} parent=1 // pred_check
      _
    $region11: #{tpu_custom_call.1} parent=1 // pred_check_branch
      %29 = sbr.rel (0) target = $region13
    $region12: #{tpu_custom_call.1} parent=1 // pred_region
      %30 = dma.done [#allocation5], 16
    $region13: #{tpu_custom_call.1} parent=1 // pred_fallthru
      _
    // Predicated region
    $region14: #{tpu_custom_call.1} parent=1 // pred_check
      _
    $region15: #{tpu_custom_call.1} parent=1 // pred_check_branch
      %32 = sbr.rel (0) target = $region17
    $region16: #{tpu_custom_call.1} parent=1 // pred_region
      %33 = dma.done [#allocation3], 128
    $region17: #{tpu_custom_call.1} parent=1 // pred_fallthru
      _
    %34 = sfence
    %s35 = sld [smem:[#allocation2]]
    %s36 = sld [smem:[#allocation2 + $0x1]]
    %s37 = sld [smem:[#allocation2 + $0x2]]
    %v38 = vld [vmem:[#allocation6] sm:$0x1]
    %v39 = vstv %s35
    %v40 = vmul.f32 %v39, %v38
    %v41 = vld [vmem:[#allocation6 + $0x1] sm:$0x1]
    %v42 = vstv %s36
    %v43 = vmul.f32 %v42, %v41
    %v44 = vadd.f32 %v40, %v43
    %v45 = vld [vmem:[#allocation6 + $0x2] sm:$0x1]
    %v46 = vstv %s37
    %v47 = vmul.f32 %v46, %v45
    %v48 = vadd.f32 %v44, %v47
    %v49 = vld [vmem:[#allocation6 + $0x3] sm:$0x1]
    %v50 = vadd.f32 %v48, %v49
    %v51 = vmax.f32 %v50, 0.0
    %v52 = vld [vmem:[#allocation6 + $0x4] sm:$0x1]
    %v53 = vmul.f32 %v51, %v52
    %vm54 = vcmask 253952
    %v55 = vsel %vm54, %v53, 0.0
    %56 = vadd.xlane.f32.xlu0 %v55
    %v57 = vpop.xlane.xlu0 %56
    %v58 = vld [vmem:[#allocation6 + $0x5] sm:$0x1]
    %v59 = vadd.f32 %v57, %v58
    %vm60 = vcmask 0
    %61 = vst.msk [vmem:[#allocation7] sm:$0x1] %vm60, %v59
    // Predicated region
    $region18: #{tpu_custom_call.1} parent=1 // pred_check
      _
    $region19: #{tpu_custom_call.1} parent=1 // pred_check_branch
      %63 = sbr.rel (0) target = $region21
    $region20: #{tpu_custom_call.1} parent=1 // pred_region
      %s65 = ssub.s32 16, 16
      %66 = vsyncadd [#allocation4], %s65
      %s68 = sshll.u32 [#allocation7], 4
      %s69 = int_to_ptr.vmem [resolvable:$true] %s68
      %71 = dma.vmem_to_hbm [thread:$0]  %s69, 16, %s2, [#allocation4]
    $region21: #{tpu_custom_call.1} parent=1 // pred_fallthru
      _
    // Predicated region
    $region22: #{tpu_custom_call.1} parent=1 // pred_check
      _
    $region23: #{tpu_custom_call.1} parent=1 // pred_check_branch
      %73 = sbr.rel (0) target = $region25
    $region24: #{tpu_custom_call.1} parent=1 // pred_region
      %74 = dma.done [#allocation4], 16
    $region25: #{tpu_custom_call.1} parent=1 // pred_fallthru
      _
    %75 = vsyncpa [#allocation3], 1
    %76 = vsyncpa [#allocation4], 1
    %77 = vsyncpa [#allocation5], 1

</llo_original>
